<compile_context>
chip_gen: v7x
topology: tpu7x:2x2x1
jax: 0.10.0
libtpu: 0.0.40
codegen_flags: <defaults>
</compile_context>

<pallas_src>
import math

import jax
import jax.numpy as jnp
from jax.experimental import pallas as pl
from jax.experimental.pallas import tpu as pltpu


_LANE = 128
_TARGET_BLOCK_BYTES = 2 * 1024 * 1024   # ~2 MiB/block; (in+out) x dbl-buffer <= ~8 MiB
_HALF_PI = math.pi / 2.0


def _round_up(a: int, b: int) -> int:
    return (a + b - 1) // b * b


def _num_tensorcores() -> int:
    """Best-effort TensorCore count of the local device (1 if unknown)."""
    try:
        info = pltpu.get_tpu_info()
        for name in ("num_cores", "core_count", "num_tensorcores", "tensorcore_count"):
            v = getattr(info, name, None)
            if isinstance(v, int) and v > 0:
                return v
    except Exception:
        pass
    try:
        v = getattr(jax.devices()[0], "num_cores", None)
        if isinstance(v, int) and v > 0:
            return v
    except Exception:
        pass
    return 1


def _quantum_activation_kernel(scal_ref, x_ref, o_ref):
    # scal_ref (SMEM, f32[2]) holds [phi, 1/phi]; no in-kernel scalar divide.
    phi = scal_ref[0]
    inv_phi = scal_ref[1]
    x = x_ref[...].astype(jnp.float32)
    # cos(t) == sin(t + pi/2): both transcendentals share the sin VPU
    # polynomial lowering (this kernel is VALU-bound, not memory-bound,
    # on v6e/v7x); within 1e-5 of the divide/cos reference.
    y = jnp.sin(x * phi) + jnp.sin(x * inv_phi + _HALF_PI)
    o_ref[...] = y.astype(o_ref.dtype)


def quantum_activation(x: jax.Array, phi_param, donate_input: bool = False) -> jax.Array:
    """Elementwise quantum activation: sin(x*phi) + cos(x/phi).

    Works for any shape/dtype; math is done in f32 (phi stays f32) and only
    the final output is cast back to x.dtype.
    """
    orig_shape = x.shape
    orig_dtype = x.dtype
    total = int(x.size)
    if total == 0:
        return x
    itemsize = jnp.dtype(orig_dtype).itemsize
    sub = max(8, 32 // itemsize)        # sublane packing: 8 f32, 16 bf16, 32 int8

    # ---- lane-dense 2-D slab; prefer an exact width (no pad / no slice) ----
    width = None
    for cand in (4096, 2048, 1024, 512, 256, 128):
        if total % cand == 0:
            width = cand
            break
    pad = 0
    if width is None:
        if total < _LANE * 8:
            # Tiny, non-128-multiple input: single (1, total) block — allowed
            # because the block equals the full array dims.
            width = total
        else:
            # Rare fallback (total not a multiple of 128): pad the flat tail.
            width = _LANE
            for cand in (4096, 2048, 1024, 512, 256):
                if total >= cand * sub:
                    width = cand
                    break
            pad = _round_up(total, width) - total

    rows = (total + pad) // width

    # ---- per-step row tile: ~2 MiB, aligned to the sublane packing ---------
    tile_r = max(sub, (_TARGET_BLOCK_BYTES // (width * itemsize)) // sub * sub)
    if tile_r >= rows:
        tile_r = rows                   # single block == full array dims
    grid_r = -(-rows // tile_r)         # last block may be ragged (masked)

    # ---- only split work on chips that actually have >= 2 TensorCores ------
    # (v5e / v6e are 1 TC: a forced split is pure per-step overhead.)
    n_tc = _num_tensorcores()
    if n_tc >= 2 and rows >= n_tc * sub:
        target_steps = _round_up(max(grid_r, n_tc), n_tc)
        tile_r = max(sub, _round_up(-(-rows // target_steps), sub))
        grid_r = -(-rows // tile_r)

    x_flat = x.reshape(-1)
    if pad:
        x_flat = jnp.pad(x_flat, (0, pad))
    x2d = x_flat.reshape(rows, width)

    # [phi, 1/phi] in f32 regardless of x dtype (matches the f32 reference).
    phi_f32 = jnp.asarray(phi_param, dtype=jnp.float32).reshape(())
    scalars = jnp.stack([phi_f32, 1.0 / phi_f32])

    n = rows * width
    cost = pl.CostEstimate(
        flops=3 * n,                    # 2 muls + 1 add per element
        transcendentals=2 * n,          # 2 sin polynomials per element
        bytes_accessed=2 * n * itemsize,
    )

    out2d = pl.pallas_call(
        _quantum_activation_kernel,
        out_shape=jax.ShapeDtypeStruct((rows, width), orig_dtype),
        grid_spec=pltpu.PrefetchScalarGridSpec(
            num_scalar_prefetch=0,
            grid=(grid_r,),
            in_specs=[
                pl.BlockSpec(memory_space=pltpu.SMEM),             # [phi, 1/phi]
                pl.BlockSpec((tile_r, width), lambda i: (i, 0)),   # x slab
            ],
            out_specs=pl.BlockSpec((tile_r, width), lambda i: (i, 0)),
        ),
        compiler_params=pltpu.CompilerParams(
            # "parallel" lets megacore-capable chips shard the row axis; on
            # 1-TC chips the grid is a plain serial loop with no extra cost.
            dimension_semantics=("parallel",),
        ),
        cost_estimate=cost,
        input_output_aliases=({1: 0} if donate_input else {}),
    )(scalars, x2d)

    if pad:
        return out2d.reshape(-1)[:total].reshape(orig_shape)
    return out2d.reshape(orig_shape)


if __name__ == "__main__":
    key = jax.random.PRNGKey(0)

    # NCHW input, consistent with the PyTorch module's typical usage.
    x = jax.random.normal(key, (2, 4, 16, 16), dtype=jnp.float32)

    # Deterministic "golden ratio" parameter (the module is handed phi_param).
    phi = jnp.float32((1.0 + 5.0 ** 0.5) / 2.0)

    out = jax.block_until_ready(quantum_activation(x, phi))

    # Reference check in plain JAX (same math as the PyTorch module).
    ref = jnp.sin(x * phi) + jnp.cos(x / phi)
    assert out.shape == x.shape
    assert out.dtype == x.dtype
    assert jnp.allclose(out, ref, atol=1e-5, rtol=1e-5)

    print("KERNEL_OK")
</pallas_src>

<mosaic_0001>
module attributes {stable_mosaic.version = 11 : i64} {
  func.func @_quantum_activation_kernel(%arg0: i32, %arg1: memref<2xf32, #tpu.memory_space<smem>>, %arg2: memref<1x2048xf32, #tpu.memory_space<vmem>>, %arg3: memref<1x2048xf32, #tpu.memory_space<vmem>>) attributes {dimension_semantics = [#tpu.dimension_semantics<parallel>], iteration_bounds = array<i64: 1>, scalar_prefetch = 0 : i64, scratch_operands = 0 : i64, tpu.core_type = #tpu.core_type<tc>, window_params = [{transform_indices = @transform_0, window_bounds = array<i64: 2>}, {transform_indices = @transform_1, window_bounds = array<i64: 1, 2048>}, {transform_indices = @transform_2, window_bounds = array<i64: 1, 2048>}]} {
    %c0 = arith.constant 0 : index
    %0 = memref.load %arg1[%c0] : memref<2xf32, #tpu.memory_space<smem>>
    %c1 = arith.constant 1 : index
    %1 = memref.load %arg1[%c1] : memref<2xf32, #tpu.memory_space<smem>>
    %c0_0 = arith.constant 0 : index
    %c0_1 = arith.constant 0 : index
    %2 = vector.load %arg2[%c0_0, %c0_1] : memref<1x2048xf32, #tpu.memory_space<vmem>>, vector<1x2048xf32>
    %3 = vector.broadcast %0 : f32 to vector<1x2048xf32>
    %4 = arith.mulf %2, %3 : vector<1x2048xf32>
    %5 = math.sin %4 : vector<1x2048xf32>
    %6 = vector.broadcast %1 : f32 to vector<1x2048xf32>
    %7 = arith.mulf %2, %6 : vector<1x2048xf32>
    %cst = arith.constant 1.57079637 : f32
    %8 = vector.broadcast %cst : f32 to vector<1x2048xf32>
    %9 = arith.addf %7, %8 : vector<1x2048xf32>
    %10 = math.sin %9 : vector<1x2048xf32>
    %11 = arith.addf %5, %10 : vector<1x2048xf32>
    %c0_2 = arith.constant 0 : index
    %c0_3 = arith.constant 0 : index
    %12 = vector.load %arg3[%c0_2, %c0_3] : memref<1x2048xf32, #tpu.memory_space<vmem>>, vector<1x2048xf32>
    tpu.vector_store %arg3[%c0_2, %c0_3], %11 {strides = array<i32>} : memref<1x2048xf32, #tpu.memory_space<vmem>>, vector<1x2048xf32>,
    return
  }
  func.func @transform_0(%arg0: i32) -> i32 {
    %c0_i32 = arith.constant 0 : i32
    %c0_i32_0 = arith.constant 0 : i32
    return %c0_i32 : i32
  }
  func.func @transform_1(%arg0: i32) -> (i32, i32) {
    %c0_i32 = arith.constant 0 : i32
    %c0_i32_0 = arith.constant 0 : i32
    return %arg0, %c0_i32 : i32, i32
  }
  func.func @transform_2(%arg0: i32) -> (i32, i32) {
    %c0_i32 = arith.constant 0 : i32
    %c0_i32_0 = arith.constant 0 : i32
    return %arg0, %c0_i32 : i32, i32
  }
}

</mosaic_0001>

<llo_original>
// kernel: tpu_custom_call.1
$region0: #{tpu_custom_call.1}
  #allocation0 [shape = 'u32[]', space=smem, size = 0x4, offset = 0x4, fixed_abs, tag = 'smem constant byte address 0x4 - core index']
  #allocation1 [shape = 'u32[144,128]{1,0:T(1,128)}', space=vmem, size = 0x12000, scoped, tag = 'internal scratch']
  %s0 = inlined_call_operand.hbm [shape: f32[2], index: 0, kind: input, shape index: {}]
  %s1 = inlined_call_operand.hbm [shape: f32[1,2048], index: 1, kind: input, shape index: {}]
  %s2 = inlined_call_operand.hbm [shape: f32[1,2048], index: 2, kind: output, shape index: {}]
  %s3 = sld [smem:[#allocation0]]
  $region26: #{tpu_custom_call.1} parent=0
    _
  %s5 = ssub.s32 1, %s3
  %s6 = scalar_select 0, %s5, %s3
  $region1: #{tpu_custom_call.1} parent=0
    #allocation2 [shape = 'u8[512]{0}', space=smem, size = 0x200, scoped, tag = 'input window, operand 0, single buffered']
    #allocation3 [shape = 's32[1]{0}', space=sflag, size = 0x4, scoped, tag = 'scoped memory for tpu_custom_call.1']
    #allocation4 [shape = 's32[1]{0}', space=sflag, size = 0x4, scoped, tag = 'scoped memory for tpu_custom_call.1']
    #allocation5 [shape = 's32[1]{0}', space=sflag, size = 0x4, scoped, tag = 'scoped memory for tpu_custom_call.1']
    #allocation6 [shape = 'u8[8192]{0}', space=vmem, size = 0x2000, scoped, tag = 'input window, operand 1, single buffered']
    #allocation7 [shape = 'u8[8192]{0}', space=vmem, size = 0x2000, scoped, tag = 'output window, operand 0, single buffered']
    %7 = vsyncpa [#allocation5], 0
    %8 = vsyncpa [#allocation3], 0
    %9 = vsyncpa [#allocation4], 0
    // Predicated region
    $region2: #{tpu_custom_call.1} parent=1 // pred_check
      _
    $region3: #{tpu_custom_call.1} parent=1 // pred_check_branch
      %11 = sbr.rel (0) target = $region5
    $region4: #{tpu_custom_call.1} parent=1 // pred_region
      %s13 = ssub.s32 16, 16
      %14 = vsyncadd [#allocation5], %s13
      %17 = dma.hbm_to_smem %s0, 16, [#allocation2], [#allocation5]
    $region5: #{tpu_custom_call.1} parent=1 // pred_fallthru
      _
    // Predicated region
    $region6: #{tpu_custom_call.1} parent=1 // pred_check
      _
    $region7: #{tpu_custom_call.1} parent=1 // pred_check_branch
      %19 = sbr.rel (0) target = $region9
    $region8: #{tpu_custom_call.1} parent=1 // pred_region
      %s21 = ssub.s32 256, 256
      %22 = vsyncadd [#allocation3], %s21
      %s24 = sshll.u32 [#allocation6], 4
      %s25 = int_to_ptr.vmem [resolvable:$true] %s24
      %27 = dma.hbm_to_vmem [thread:$0]  %s1, 256, %s25, [#allocation3]
    $region9: #{tpu_custom_call.1} parent=1 // pred_fallthru
      _
    // Predicated region
    $region10: #{tpu_custom_call.1} parent=1 // pred_check
      _
    $region11: #{tpu_custom_call.1} parent=1 // pred_check_branch
      %29 = sbr.rel (0) target = $region13
    $region12: #{tpu_custom_call.1} parent=1 // pred_region
      %30 = dma.done [#allocation5], 16
    $region13: #{tpu_custom_call.1} parent=1 // pred_fallthru
      _
    // Predicated region
    $region14: #{tpu_custom_call.1} parent=1 // pred_check
      _
    $region15: #{tpu_custom_call.1} parent=1 // pred_check_branch
      %32 = sbr.rel (0) target = $region17
    $region16: #{tpu_custom_call.1} parent=1 // pred_region
      %33 = dma.done [#allocation3], 256
    $region17: #{tpu_custom_call.1} parent=1 // pred_fallthru
      _
    %34 = sfence
    %s35 = sld [smem:[#allocation2]]
    %s36 = sld [smem:[#allocation2 + $0x1]]
    %v37 = vld [vmem:[#allocation6] sm:$0xff]
    %v38 = vld [vmem:[#allocation6 + $0x8] sm:$0xff]
    %v39 = vstv %s35
    %v40 = vmul.f32 %v37, %v39
    %v41 = vmul.f32 %v38, %v39
    %v42 = vand.u32 2147483647, %v40
    %vm43 = vcmp.le.f32.partialorder %v42, 0.7853982
    %vm44 = vcmp.lt.s32.totalorder %v40, 0
    %v45 = vand.u32 %v40, 2139095040
    %v46 = vshrl.u32 %v45, 23
    %v47 = vsub.s32 %v46, 127
    %v48 = vand.u32 2147483647, %v40
    %v49 = vand.u32 %v48, 8388607
    %v50 = vor.u32 %v49, 8388608
    %v51 = vsub.s32 0, %v50
    %v52 = vadd.s32 %v47, 1
    %vm53 = vcmp.gt.s32.totalorder %v52, 0
    %v54 = vsel %vm53, %v52, 0
    %v55 = vshrl.u32 %v54, 5
    %v56 = vand.u32 %v54, 31
    %v57 = vsub.s32 32, %v56
    %v58 = vshrl.u32 683565275, %v57
    %v59 = vshll.u32 683565275, %v56
    %v60 = vshrl.u32 2475754826, %v57
    %v61 = vor.u32 %v59, %v60
    %v62 = vshll.u32 2475754826, %v56
    %v63 = vshrl.u32 2131351028, %v57
    %v64 = vor.u32 %v62, %v63
    %v65 = vshll.u32 2131351028, %v56
    %v66 = vshrl.u32 2102212464, %v57
    %v67 = vor.u32 %v65, %v66
    %v68 = vshll.u32 2102212464, %v56
    %v69 = vshrl.u32 920167782, %v57
    %v70 = vor.u32 %v68, %v69
    %v71 = vshll.u32 920167782, %v56
    %v72 = vshrl.u32 1326507024, %v57
    %v73 = vor.u32 %v71, %v72
    %vm74 = vcmp.lt.s32.totalorder %v55, 1
    %vm75 = vcmp.lt.s32.totalorder %v55, 2
    %vm76 = vcmp.lt.s32.totalorder %v55, 3
    %vm77 = vcmp.lt.s32.totalorder %v55, 4
    %v78 = vsel %vm74, %v58, %v61
    %v79 = vsel %vm77, %v67, 2102212464
    %v80 = vsel %vm76, %v64, %v79
    %v81 = vsel %vm75, %v78, %v80
    %v82 = vsel %vm74, %v61, %v64
    %v83 = vsel %vm77, %v70, 920167782
    %v84 = vsel %vm76, %v67, %v83
    %v85 = vsel %vm75, %v82, %v84
    %v86 = vsel %vm74, %v64, %v67
    %v87 = vsel %vm77, %v73, 1326507024
    %v88 = vsel %vm76, %v70, %v87
    %v89 = vsel %vm75, %v86, %v88
    %v90 = vshll.u32 %v50, 8
    %v91 = vmul.u32.u64.compose %v90, %v89
    %v92 = vextract.low.u32 %v91
    %v93 = vextract.high.u32 %v91
    %v94 = vmul.u32.u64.compose %v90, %v85
    %v95 = vextract.low.u32 %v94
    %v96 = vextract.high.u32 %v94
    %v97 = vmul.u32 %v90, %v81
    %v98 = vadd.s32 %v93, %v95
    %vm99 = vc.u32 %v93, %v95
    %v100 = vadd.s32 %v96, 1
    %v101 = vsel %vm99, %v100, %v96
    %v102 = vadd.s32 %v97, %v101
    %v103 = vadd.s32 %v102, 536870912
    %v104 = vshrl.u32 %v103, 30
    %v105 = vshll.u32 %v104, 30
    %v106 = vsub.s32 %v102, %v105
    %vm107 = vcmp.lt.s32.totalorder %v106, 0
    %v108 = vsub.s32 0, %v106
    %v109 = vsel %vm107, %v108, %v106
    %v110 = vclz %v109
    %v111 = vsub.s32 %v110, 2
    %vm112 = vcmp.gt.s32.totalorder 0, %v111
    %v113 = vsel %vm112, 0, %v111
    %v114 = vsub.s32 32, %v113
    %v115 = vshll.u32 %v106, %v113
    %v116 = vshrl.u32 %v98, %v114
    %v117 = vor.u32 %v115, %v116
    %v118 = vsub.s32 4294967266, %v113
    %v119 = vadd.s32 %v118, 127
    %v120 = vshll.u32 %v119, 23
    %v121 = vor.u32 4788187, %v120
    %v122 = vand.u32 2147483647, %v121
    %v124 = vcvt.s32.f32 %v117
    %v125 = vmul.f32 %v124, %v122
    %v126 = vxor.u32 %v125, 2147483648
    %v127 = vsel %vm44, %v126, %v125
    %v128 = vsub.s32 4, %v104
    %v129 = vsel %vm44, %v128, %v104
    %v130 = vsel %vm43, %v40, %v127
    %v131 = vsel %vm43, 0, %v129
    %v132 = vcosq.f32.pop %v130
    %v133 = vsinq.f32.pop %v130
    %vm134 = vweird.f32 %v40
    %v135 = vadd.s32 %v131, 3
    %v136 = vand.u32 %v135, 3
    %vm137 = vcmp.lt.s32.totalorder %v136, 2
    %vm138 = vcmp.eq.s32.totalorder %v136, 0
    %v139 = vxor.u32 %v133, 2147483648
    %v140 = vsel %vm138, %v132, %v139
    %vm141 = vcmp.eq.s32.totalorder %v136, 2
    %v142 = vxor.u32 %v132, 2147483648
    %v143 = vsel %vm141, %v142, %v133
    %v144 = vsel %vm137, %v140, %v143
    %v145 = vsel %vm134, nan, %v144
    %v146 = vand.u32 2147483647, %v41
    %vm147 = vcmp.le.f32.partialorder %v146, 0.7853982
    %vm148 = vcmp.lt.s32.totalorder %v41, 0
    %v149 = vand.u32 %v41, 2139095040
    %v150 = vshrl.u32 %v149, 23
    %v151 = vsub.s32 %v150, 127
    %v152 = vand.u32 2147483647, %v41
    %v153 = vand.u32 %v152, 8388607
    %v154 = vor.u32 %v153, 8388608
    %v155 = vsub.s32 0, %v154
    %v156 = vadd.s32 %v151, 1
    %vm157 = vcmp.gt.s32.totalorder %v156, 0
    %v158 = vsel %vm157, %v156, 0
    %v159 = vshrl.u32 %v158, 5
    %v160 = vand.u32 %v158, 31
    %v161 = vsub.s32 32, %v160
    %v162 = vshrl.u32 683565275, %v161
    %v163 = vshll.u32 683565275, %v160
    %v164 = vshrl.u32 2475754826, %v161
    %v165 = vor.u32 %v163, %v164
    %v166 = vshll.u32 2475754826, %v160
    %v167 = vshrl.u32 2131351028, %v161
    %v168 = vor.u32 %v166, %v167
    %v169 = vshll.u32 2131351028, %v160
    %v170 = vshrl.u32 2102212464, %v161
    %v171 = vor.u32 %v169, %v170
    %v172 = vshll.u32 2102212464, %v160
    %v173 = vshrl.u32 920167782, %v161
    %v174 = vor.u32 %v172, %v173
    %v175 = vshll.u32 920167782, %v160
    %v176 = vshrl.u32 1326507024, %v161
    %v177 = vor.u32 %v175, %v176
    %vm178 = vcmp.lt.s32.totalorder %v159, 1
    %vm179 = vcmp.lt.s32.totalorder %v159, 2
    %vm180 = vcmp.lt.s32.totalorder %v159, 3
    %vm181 = vcmp.lt.s32.totalorder %v159, 4
    %v182 = vsel %vm178, %v162, %v165
    %v183 = vsel %vm181, %v171, 2102212464
    %v184 = vsel %vm180, %v168, %v183
    %v185 = vsel %vm179, %v182, %v184
    %v186 = vsel %vm178, %v165, %v168
    %v187 = vsel %vm181, %v174, 920167782
    %v188 = vsel %vm180, %v171, %v187
    %v189 = vsel %vm179, %v186, %v188
    %v190 = vsel %vm178, %v168, %v171
    %v191 = vsel %vm181, %v177, 1326507024
    %v192 = vsel %vm180, %v174, %v191
    %v193 = vsel %vm179, %v190, %v192
    %v194 = vshll.u32 %v154, 8
    %v195 = vmul.u32.u64.compose %v194, %v193
    %v196 = vextract.low.u32 %v195
    %v197 = vextract.high.u32 %v195
    %v198 = vmul.u32.u64.compose %v194, %v189
    %v199 = vextract.low.u32 %v198
    %v200 = vextract.high.u32 %v198
    %v201 = vmul.u32 %v194, %v185
    %v202 = vadd.s32 %v197, %v199
    %vm203 = vc.u32 %v197, %v199
    %v204 = vadd.s32 %v200, 1
    %v205 = vsel %vm203, %v204, %v200
    %v206 = vadd.s32 %v201, %v205
    %v207 = vadd.s32 %v206, 536870912
    %v208 = vshrl.u32 %v207, 30
    %v209 = vshll.u32 %v208, 30
    %v210 = vsub.s32 %v206, %v209
    %vm211 = vcmp.lt.s32.totalorder %v210, 0
    %v212 = vsub.s32 0, %v210
    %v213 = vsel %vm211, %v212, %v210
    %v214 = vclz %v213
    %v215 = vsub.s32 %v214, 2
    %vm216 = vcmp.gt.s32.totalorder 0, %v215
    %v217 = vsel %vm216, 0, %v215
    %v218 = vsub.s32 32, %v217
    %v219 = vshll.u32 %v210, %v217
    %v220 = vshrl.u32 %v202, %v218
    %v221 = vor.u32 %v219, %v220
    %v222 = vsub.s32 4294967266, %v217
    %v223 = vadd.s32 %v222, 127
    %v224 = vshll.u32 %v223, 23
    %v225 = vor.u32 4788187, %v224
    %v226 = vand.u32 2147483647, %v225
    %v228 = vcvt.s32.f32 %v221
    %v229 = vmul.f32 %v228, %v226
    %v230 = vxor.u32 %v229, 2147483648
    %v231 = vsel %vm148, %v230, %v229
    %v232 = vsub.s32 4, %v208
    %v233 = vsel %vm148, %v232, %v208
    %v234 = vsel %vm147, %v41, %v231
    %v235 = vsel %vm147, 0, %v233
    %v236 = vcosq.f32.pop %v234
    %v237 = vsinq.f32.pop %v234
    %vm238 = vweird.f32 %v41
    %v239 = vadd.s32 %v235, 3
    %v240 = vand.u32 %v239, 3
    %vm241 = vcmp.lt.s32.totalorder %v240, 2
    %vm242 = vcmp.eq.s32.totalorder %v240, 0
    %v243 = vxor.u32 %v237, 2147483648
    %v244 = vsel %vm242, %v236, %v243
    %vm245 = vcmp.eq.s32.totalorder %v240, 2
    %v246 = vxor.u32 %v236, 2147483648
    %v247 = vsel %vm245, %v246, %v237
    %v248 = vsel %vm241, %v244, %v247
    %v249 = vsel %vm238, nan, %v248
    %v250 = vstv %s36
    %v251 = vmul.f32 %v37, %v250
    %v252 = vmul.f32 %v38, %v250
    %v253 = vadd.f32 %v251, 1.5707964
    %v254 = vadd.f32 %v252, 1.5707964
    %v255 = vand.u32 2147483647, %v253
    %vm256 = vcmp.le.f32.partialorder %v255, 0.7853982
    %vm257 = vcmp.lt.s32.totalorder %v253, 0
    %v258 = vand.u32 %v253, 2139095040
    %v259 = vshrl.u32 %v258, 23
    %v260 = vsub.s32 %v259, 127
    %v261 = vand.u32 2147483647, %v253
    %v262 = vand.u32 %v261, 8388607
    %v263 = vor.u32 %v262, 8388608
    %v264 = vsub.s32 0, %v263
    %v265 = vadd.s32 %v260, 1
    %vm266 = vcmp.gt.s32.totalorder %v265, 0
    %v267 = vsel %vm266, %v265, 0
    %v268 = vshrl.u32 %v267, 5
    %v269 = vand.u32 %v267, 31
    %v270 = vsub.s32 32, %v269
    %v271 = vshrl.u32 683565275, %v270
    %v272 = vshll.u32 683565275, %v269
    %v273 = vshrl.u32 2475754826, %v270
    %v274 = vor.u32 %v272, %v273
    %v275 = vshll.u32 2475754826, %v269
    %v276 = vshrl.u32 2131351028, %v270
    %v277 = vor.u32 %v275, %v276
    %v278 = vshll.u32 2131351028, %v269
    %v279 = vshrl.u32 2102212464, %v270
    %v280 = vor.u32 %v278, %v279
    %v281 = vshll.u32 2102212464, %v269
    %v282 = vshrl.u32 920167782, %v270
    %v283 = vor.u32 %v281, %v282
    %v284 = vshll.u32 920167782, %v269
    %v285 = vshrl.u32 1326507024, %v270
    %v286 = vor.u32 %v284, %v285
    %vm287 = vcmp.lt.s32.totalorder %v268, 1
    %vm288 = vcmp.lt.s32.totalorder %v268, 2
    %vm289 = vcmp.lt.s32.totalorder %v268, 3
    %vm290 = vcmp.lt.s32.totalorder %v268, 4
    %v291 = vsel %vm287, %v271, %v274
    %v292 = vsel %vm290, %v280, 2102212464
    %v293 = vsel %vm289, %v277, %v292
    %v294 = vsel %vm288, %v291, %v293
    %v295 = vsel %vm287, %v274, %v277
    %v296 = vsel %vm290, %v283, 920167782
    %v297 = vsel %vm289, %v280, %v296
    %v298 = vsel %vm288, %v295, %v297
    %v299 = vsel %vm287, %v277, %v280
    %v300 = vsel %vm290, %v286, 1326507024
    %v301 = vsel %vm289, %v283, %v300
    %v302 = vsel %vm288, %v299, %v301
    %v303 = vshll.u32 %v263, 8
    %v304 = vmul.u32.u64.compose %v303, %v302
    %v305 = vextract.low.u32 %v304
    %v306 = vextract.high.u32 %v304
    %v307 = vmul.u32.u64.compose %v303, %v298
    %v308 = vextract.low.u32 %v307
    %v309 = vextract.high.u32 %v307
    %v310 = vmul.u32 %v303, %v294
    %v311 = vadd.s32 %v306, %v308
    %vm312 = vc.u32 %v306, %v308
    %v313 = vadd.s32 %v309, 1
    %v314 = vsel %vm312, %v313, %v309
    %v315 = vadd.s32 %v310, %v314
    %v316 = vadd.s32 %v315, 536870912
    %v317 = vshrl.u32 %v316, 30
    %v318 = vshll.u32 %v317, 30
    %v319 = vsub.s32 %v315, %v318
    %vm320 = vcmp.lt.s32.totalorder %v319, 0
    %v321 = vsub.s32 0, %v319
    %v322 = vsel %vm320, %v321, %v319
    %v323 = vclz %v322
    %v324 = vsub.s32 %v323, 2
    %vm325 = vcmp.gt.s32.totalorder 0, %v324
    %v326 = vsel %vm325, 0, %v324
    %v327 = vsub.s32 32, %v326
    %v328 = vshll.u32 %v319, %v326
    %v329 = vshrl.u32 %v311, %v327
    %v330 = vor.u32 %v328, %v329
    %v331 = vsub.s32 4294967266, %v326
    %v332 = vadd.s32 %v331, 127
    %v333 = vshll.u32 %v332, 23
    %v334 = vor.u32 4788187, %v333
    %v335 = vand.u32 2147483647, %v334
    %v337 = vcvt.s32.f32 %v330
    %v338 = vmul.f32 %v337, %v335
    %v339 = vxor.u32 %v338, 2147483648
    %v340 = vsel %vm257, %v339, %v338
    %v341 = vsub.s32 4, %v317
    %v342 = vsel %vm257, %v341, %v317
    %v343 = vsel %vm256, %v253, %v340
    %v344 = vsel %vm256, 0, %v342
    %v345 = vcosq.f32.pop %v343
    %v346 = vsinq.f32.pop %v343
    %vm347 = vweird.f32 %v253
    %v348 = vadd.s32 %v344, 3
    %v349 = vand.u32 %v348, 3
    %vm350 = vcmp.lt.s32.totalorder %v349, 2
    %vm351 = vcmp.eq.s32.totalorder %v349, 0
    %v352 = vxor.u32 %v346, 2147483648
    %v353 = vsel %vm351, %v345, %v352
    %vm354 = vcmp.eq.s32.totalorder %v349, 2
    %v355 = vxor.u32 %v345, 2147483648
    %v356 = vsel %vm354, %v355, %v346
    %v357 = vsel %vm350, %v353, %v356
    %v358 = vsel %vm347, nan, %v357
    %v359 = vand.u32 2147483647, %v254
    %vm360 = vcmp.le.f32.partialorder %v359, 0.7853982
    %vm361 = vcmp.lt.s32.totalorder %v254, 0
    %v362 = vand.u32 %v254, 2139095040
    %v363 = vshrl.u32 %v362, 23
    %v364 = vsub.s32 %v363, 127
    %v365 = vand.u32 2147483647, %v254
    %v366 = vand.u32 %v365, 8388607
    %v367 = vor.u32 %v366, 8388608
    %v368 = vsub.s32 0, %v367
    %v369 = vadd.s32 %v364, 1
    %vm370 = vcmp.gt.s32.totalorder %v369, 0
    %v371 = vsel %vm370, %v369, 0
    %v372 = vshrl.u32 %v371, 5
    %v373 = vand.u32 %v371, 31
    %v374 = vsub.s32 32, %v373
    %v375 = vshrl.u32 683565275, %v374
    %v376 = vshll.u32 683565275, %v373
    %v377 = vshrl.u32 2475754826, %v374
    %v378 = vor.u32 %v376, %v377
    %v379 = vshll.u32 2475754826, %v373
    %v380 = vshrl.u32 2131351028, %v374
    %v381 = vor.u32 %v379, %v380
    %v382 = vshll.u32 2131351028, %v373
    %v383 = vshrl.u32 2102212464, %v374
    %v384 = vor.u32 %v382, %v383
    %v385 = vshll.u32 2102212464, %v373
    %v386 = vshrl.u32 920167782, %v374
    %v387 = vor.u32 %v385, %v386
    %v388 = vshll.u32 920167782, %v373
    %v389 = vshrl.u32 1326507024, %v374
    %v390 = vor.u32 %v388, %v389
    %vm391 = vcmp.lt.s32.totalorder %v372, 1
    %vm392 = vcmp.lt.s32.totalorder %v372, 2
    %vm393 = vcmp.lt.s32.totalorder %v372, 3
    %vm394 = vcmp.lt.s32.totalorder %v372, 4
    %v395 = vsel %vm391, %v375, %v378
    %v396 = vsel %vm394, %v384, 2102212464
    %v397 = vsel %vm393, %v381, %v396
    %v398 = vsel %vm392, %v395, %v397
    %v399 = vsel %vm391, %v378, %v381
    %v400 = vsel %vm394, %v387, 920167782
    %v401 = vsel %vm393, %v384, %v400
    %v402 = vsel %vm392, %v399, %v401
    %v403 = vsel %vm391, %v381, %v384
    %v404 = vsel %vm394, %v390, 1326507024
    %v405 = vsel %vm393, %v387, %v404
    %v406 = vsel %vm392, %v403, %v405
    %v407 = vshll.u32 %v367, 8
    %v408 = vmul.u32.u64.compose %v407, %v406
    %v409 = vextract.low.u32 %v408
    %v410 = vextract.high.u32 %v408
    %v411 = vmul.u32.u64.compose %v407, %v402
    %v412 = vextract.low.u32 %v411
    %v413 = vextract.high.u32 %v411
    %v414 = vmul.u32 %v407, %v398
    %v415 = vadd.s32 %v410, %v412
    %vm416 = vc.u32 %v410, %v412
    %v417 = vadd.s32 %v413, 1
    %v418 = vsel %vm416, %v417, %v413
    %v419 = vadd.s32 %v414, %v418
    %v420 = vadd.s32 %v419, 536870912
    %v421 = vshrl.u32 %v420, 30
    %v422 = vshll.u32 %v421, 30
    %v423 = vsub.s32 %v419, %v422
    %vm424 = vcmp.lt.s32.totalorder %v423, 0
    %v425 = vsub.s32 0, %v423
    %v426 = vsel %vm424, %v425, %v423
    %v427 = vclz %v426
    %v428 = vsub.s32 %v427, 2
    %vm429 = vcmp.gt.s32.totalorder 0, %v428
    %v430 = vsel %vm429, 0, %v428
    %v431 = vsub.s32 32, %v430
    %v432 = vshll.u32 %v423, %v430
    %v433 = vshrl.u32 %v415, %v431
    %v434 = vor.u32 %v432, %v433
    %v435 = vsub.s32 4294967266, %v430
    %v436 = vadd.s32 %v435, 127
    %v437 = vshll.u32 %v436, 23
    %v438 = vor.u32 4788187, %v437
    %v439 = vand.u32 2147483647, %v438
    %v441 = vcvt.s32.f32 %v434
    %v442 = vmul.f32 %v441, %v439
    %v443 = vxor.u32 %v442, 2147483648
    %v444 = vsel %vm361, %v443, %v442
    %v445 = vsub.s32 4, %v421
    %v446 = vsel %vm361, %v445, %v421
    %v447 = vsel %vm360, %v254, %v444
    %v448 = vsel %vm360, 0, %v446
    %v449 = vcosq.f32.pop %v447
    %v450 = vsinq.f32.pop %v447
    %vm451 = vweird.f32 %v254
    %v452 = vadd.s32 %v448, 3
    %v453 = vand.u32 %v452, 3
    %vm454 = vcmp.lt.s32.totalorder %v453, 2
    %vm455 = vcmp.eq.s32.totalorder %v453, 0
    %v456 = vxor.u32 %v450, 2147483648
    %v457 = vsel %vm455, %v449, %v456
    %vm458 = vcmp.eq.s32.totalorder %v453, 2
    %v459 = vxor.u32 %v449, 2147483648
    %v460 = vsel %vm458, %v459, %v450
    %v461 = vsel %vm454, %v457, %v460
    %v462 = vsel %vm451, nan, %v461
    %v463 = vadd.f32 %v145, %v358
    %v464 = vadd.f32 %v249, %v462
    %465 = vst [vmem:[#allocation7] sm:$0xff] %v463
    %466 = vst [vmem:[#allocation7 + $0x8] sm:$0xff] %v464
    // Predicated region
    $region18: #{tpu_custom_call.1} parent=1 // pred_check
      _
    $region19: #{tpu_custom_call.1} parent=1 // pred_check_branch
      %468 = sbr.rel (0) target = $region21
    $region20: #{tpu_custom_call.1} parent=1 // pred_region
      %s470 = ssub.s32 256, 256
      %471 = vsyncadd [#allocation4], %s470
      %s473 = sshll.u32 [#allocation7], 4
      %s474 = int_to_ptr.vmem [resolvable:$true] %s473
      %476 = dma.vmem_to_hbm [thread:$0]  %s474, 256, %s2, [#allocation4]
    $region21: #{tpu_custom_call.1} parent=1 // pred_fallthru
      _
    // Predicated region
    $region22: #{tpu_custom_call.1} parent=1 // pred_check
      _
    $region23: #{tpu_custom_call.1} parent=1 // pred_check_branch
      %478 = sbr.rel (0) target = $region25
    $region24: #{tpu_custom_call.1} parent=1 // pred_region
      %479 = dma.done [#allocation4], 256
    $region25: #{tpu_custom_call.1} parent=1 // pred_fallthru
      _
    %480 = vsyncpa [#allocation3], 1
    %481 = vsyncpa [#allocation4], 1
    %482 = vsyncpa [#allocation5], 1

</llo_original>
